<compile_context>
chip_gen: v7x
topology: tpu7x:2x2x1
jax: 0.10.0
libtpu: 0.0.40
codegen_flags: <defaults>
</compile_context>

<pallas_src>
import jax
import jax.numpy as jnp
from jax.experimental import pallas as pl
from jax.experimental.pallas import tpu as pltpu


# The module's constant index buffer, as a static Python tuple (baked at trace
# time -- equivalent of `torch.tensor([0, 1])` inside forward()).
_IDX = (0, 1)


def _make_add_index_kernel(idx, rows):
    """Build a kernel computing (x + y)[idx] for a *static* index tuple."""
    # Trace-time clamp (PyTorch would raise on OOB; TPU VMEM has no check).
    idx = tuple(min(max(int(i), 0), rows - 1) for i in idx)
    # Fast path: index is the identity prefix [0, 1, ..., n-1] -> plain slice.
    is_identity_prefix = idx == tuple(range(len(idx)))

    def kernel(x_ref, y_ref, out_ref):
        # Elementwise add on the VPU; result stays in vregs.
        z = x_ref[...] + y_ref[...]                          # (rows, cols)

        if is_identity_prefix:
            # Gather is a no-op row prefix: one unmasked-as-possible store.
            out_ref[...] = z[: len(idx), :].astype(out_ref.dtype)
        else:
            # Static-index gather: pure vreg data movement (no MXU, no SMEM).
            gathered = jnp.concatenate([z[i : i + 1, :] for i in idx], axis=0)
            out_ref[...] = gathered.astype(out_ref.dtype)

    return kernel


def simple_index_tensor(x, y):
    """Pallas equivalent of SimpleIndexTensor.forward: (x + y)[[0, 1]]."""
    rows, cols = x.shape
    kernel = _make_add_index_kernel(_IDX, rows)
    n_idx = len(_IDX)

    return pl.pallas_call(
        kernel,
        out_shape=jax.ShapeDtypeStruct((n_idx, cols), x.dtype),
        in_specs=[
            pl.BlockSpec(memory_space=pltpu.MemorySpace.VMEM),   # x (whole array)
            pl.BlockSpec(memory_space=pltpu.MemorySpace.VMEM),   # y (whole array)
        ],
        out_specs=pl.BlockSpec(memory_space=pltpu.MemorySpace.VMEM),
    )(x, y)


if __name__ == "__main__":
    key = jax.random.PRNGKey(0)
    kx, ky = jax.random.split(key)

    # Example inputs per get_example_inputs(): two (2, 3) tensors.
    x = jax.random.normal(kx, (2, 3), dtype=jnp.float32)
    y = jax.random.normal(ky, (2, 3), dtype=jnp.float32)

    out = simple_index_tensor(x, y)
    out = jax.block_until_ready(out)

    # Reference: same semantics as torch's z[idx] with idx = [0, 1].
    ref = (x + y)[jnp.array(list(_IDX))]
    assert out.shape == (2, 3), out.shape
    # Add + copy is bit-exact data movement -> exact match expected.
    assert jnp.array_equal(out, ref), (out, ref)

    print("KERNEL_OK")
</pallas_src>

<mosaic_0001>
module attributes {stable_mosaic.version = 11 : i64} {
  func.func @kernel(%arg0: memref<2x3xf32, #tpu.memory_space<vmem>>, %arg1: memref<2x3xf32, #tpu.memory_space<vmem>>, %arg2: memref<2x3xf32, #tpu.memory_space<vmem>>) attributes {dimension_semantics = [], scalar_prefetch = 0 : i64, scratch_operands = 0 : i64, tpu.core_type = #tpu.core_type<tc>} {
    %c0 = arith.constant 0 : index
    %c0_0 = arith.constant 0 : index
    %0 = vector.load %arg0[%c0, %c0_0] : memref<2x3xf32, #tpu.memory_space<vmem>>, vector<2x3xf32>
    %c0_1 = arith.constant 0 : index
    %c0_2 = arith.constant 0 : index
    %1 = vector.load %arg1[%c0_1, %c0_2] : memref<2x3xf32, #tpu.memory_space<vmem>>, vector<2x3xf32>
    %2 = arith.addf %0, %1 : vector<2x3xf32>
    %c0_3 = arith.constant 0 : index
    %c0_4 = arith.constant 0 : index
    %3 = vector.load %arg2[%c0_3, %c0_4] : memref<2x3xf32, #tpu.memory_space<vmem>>, vector<2x3xf32>
    tpu.vector_store %arg2[%c0_3, %c0_4], %2 {strides = array<i32>} : memref<2x3xf32, #tpu.memory_space<vmem>>, vector<2x3xf32>,
    return
  }
}

</mosaic_0001>

<llo_original>
// kernel: tpu_custom_call.1
$region0: #{tpu_custom_call.1}
  #allocation0 [shape = 'u32[]', space=smem, size = 0x4, offset = 0x4, fixed_abs, tag = 'smem constant byte address 0x4 - core index']
  #allocation1 [shape = 'u32[144,128]{1,0:T(1,128)}', space=vmem, size = 0x12000, scoped, tag = 'internal scratch']
  %s0 = inlined_call_operand.hbm [shape: f32[2,3], index: 0, kind: input, shape index: {}]
  %s1 = inlined_call_operand.vmem [shape: f32[2,3], index: 1, kind: input, shape index: {}]
  %s2 = inlined_call_operand.hbm [shape: f32[2,3], index: 2, kind: output, shape index: {}]
  %s3 = sld [smem:[#allocation0]]
  $region22: #{tpu_custom_call.1} parent=0
    _
  %s5 = ssub.s32 1, %s3
  %s6 = scalar_select 0, %s5, %s3
  $region1: #{tpu_custom_call.1} parent=0
    #allocation2 [shape = 'u8[1024]{0}', space=vmem, size = 0x400, scoped, tag = 'input window, operand 0, single buffered']
    #allocation3 [shape = 's32[1]{0}', space=sflag, size = 0x4, scoped, tag = 'scoped memory for tpu_custom_call.1']
    #allocation4 [shape = 's32[1]{0}', space=sflag, size = 0x4, scoped, tag = 'scoped memory for tpu_custom_call.1']
    #allocation5 [shape = 'u8[1024]{0}', space=vmem, size = 0x400, scoped, tag = 'output window, operand 0, single buffered']
    %7 = vsyncpa [#allocation3], 0
    %8 = vsyncpa [#allocation4], 0
    // Predicated region
    $region2: #{tpu_custom_call.1} parent=1 // pred_check
      _
    $region3: #{tpu_custom_call.1} parent=1 // pred_check_branch
      %10 = sbr.rel (0) target = $region5
    $region4: #{tpu_custom_call.1} parent=1 // pred_region
      %s12 = ssub.s32 32, 32
      %13 = vsyncadd [#allocation3], %s12
      %s15 = sshll.u32 [#allocation2], 4
      %s16 = int_to_ptr.vmem [resolvable:$true] %s15
      %18 = dma.hbm_to_vmem [thread:$0]  %s0, 32, %s16, [#allocation3]
    $region5: #{tpu_custom_call.1} parent=1 // pred_fallthru
      _
    // Predicated region
    $region6: #{tpu_custom_call.1} parent=1 // pred_check
      _
    $region7: #{tpu_custom_call.1} parent=1 // pred_check_branch
      %20 = sbr.rel (0) target = $region9
    $region8: #{tpu_custom_call.1} parent=1 // pred_region
      _
    $region9: #{tpu_custom_call.1} parent=1 // pred_fallthru
      _
    // Predicated region
    $region10: #{tpu_custom_call.1} parent=1 // pred_check
      _
    $region11: #{tpu_custom_call.1} parent=1 // pred_check_branch
      %22 = sbr.rel (0) target = $region13
    $region12: #{tpu_custom_call.1} parent=1 // pred_region
      %23 = dma.done [#allocation3], 32
    $region13: #{tpu_custom_call.1} parent=1 // pred_fallthru
      _
    %v24 = vld [vmem:[#allocation2] sm:$0x3]
    %v25 = vld [vmem:[%s1] sm:$0x3]
    %v26 = vadd.f32 %v24, %v25
    %vm27 = vcmask 17408
    %28 = vst.msk [vmem:[#allocation5] sm:$0x3] %vm27, %v26
    // Predicated region
    $region14: #{tpu_custom_call.1} parent=1 // pred_check
      _
    $region15: #{tpu_custom_call.1} parent=1 // pred_check_branch
      %30 = sbr.rel (0) target = $region17
    $region16: #{tpu_custom_call.1} parent=1 // pred_region
      %s32 = ssub.s32 32, 32
      %33 = vsyncadd [#allocation4], %s32
      %s35 = sshll.u32 [#allocation5], 4
      %s36 = int_to_ptr.vmem [resolvable:$true] %s35
      %38 = dma.vmem_to_hbm [thread:$0]  %s36, 32, %s2, [#allocation4]
    $region17: #{tpu_custom_call.1} parent=1 // pred_fallthru
      _
    // Predicated region
    $region18: #{tpu_custom_call.1} parent=1 // pred_check
      _
    $region19: #{tpu_custom_call.1} parent=1 // pred_check_branch
      %40 = sbr.rel (0) target = $region21
    $region20: #{tpu_custom_call.1} parent=1 // pred_region
      %41 = dma.done [#allocation4], 32
    $region21: #{tpu_custom_call.1} parent=1 // pred_fallthru
      _
    %42 = vsyncpa [#allocation3], 1
    %43 = vsyncpa [#allocation4], 1

</llo_original>
